<compile_context>
chip_gen: v7x
topology: tpu7x:2x2x1
jax: 0.10.0
libtpu: 0.0.40
codegen_flags: <defaults>
</compile_context>

<pallas_src>
import jax
import jax.numpy as jnp
from jax.experimental import pallas as pl
from jax.experimental.pallas import tpu as pltpu

BN_EPS = 1e-5
LANE = 128
SUBLANE = 8
MAX_TILE_N = 512


def _round_up(x, m):
    return (x + m - 1) // m * m


def _pick_tile_n(n, d_in_p, hid_p, out_p):
    # Keep double-buffered x/out tiles + the f32 h tile + resident weights
    # comfortably under the default scoped-VMEM limit on all generations
    # (16 MiB v5e, 32 MiB v6e/v7x; v7x physical VMEM is only 64 MiB).
    budget = 12 * 1024 * 1024
    weight_bytes = 4 * (d_in_p * hid_p + hid_p * out_p + 3 * hid_p + out_p)
    budget = max(budget - weight_bytes, 1 << 20)
    bytes_per_row = 4 * (2 * d_in_p + 2 * out_p + hid_p)
    max_rows = max(SUBLANE, (budget // bytes_per_row) // SUBLANE * SUBLANE)
    return min(MAX_TILE_N, _round_up(n, SUBLANE), max_rows)


# ---- phase 1: per-feature sum / sum-of-squares of h = x @ w1 (global BN) ----
def _stats_kernel(x_ref, w1_ref, sum_ref, sumsq_ref):
    @pl.when(pl.program_id(0) == 0)
    def _():
        sum_ref[...] = jnp.zeros_like(sum_ref)
        sumsq_ref[...] = jnp.zeros_like(sumsq_ref)

    h = jnp.dot(x_ref[...], w1_ref[...], preferred_element_type=jnp.float32)
    sum_ref[...] += jnp.sum(h, axis=0, keepdims=True)
    sumsq_ref[...] += jnp.sum(h * h, axis=0, keepdims=True)


# ---- phase 2: h = x @ w1 ; y = relu(h*scale + shift) @ w2 + b2 --------------
def _fwd_kernel(x_ref, w1_ref, scale_ref, shift_ref, w2_ref, b2_ref, o_ref):
    h = jnp.dot(x_ref[...], w1_ref[...], preferred_element_type=jnp.float32)
    h = h * scale_ref[...] + shift_ref[...]   # folded BN affine: one FMA pass
    h = jnp.maximum(h, 0.0)                   # ReLU (f32 VPU math, v5e-safe)
    out = jnp.dot(h.astype(w2_ref.dtype), w2_ref[...],
                  preferred_element_type=jnp.float32) + b2_ref[...]
    o_ref[...] = out.astype(o_ref.dtype)


def downstream_classification(x, w1, b1, gamma, beta, w2, b2,
                              compute_dtype=jnp.float32):
    """Forward pass of Linear -> BatchNorm1d(training mode) -> ReLU -> Linear.

    x:  (N, input_dim); w1: (input_dim, hidden); w2: (hidden, output)
    b1 is accepted for API parity but unused: the BN batch-mean subtraction
    cancels it exactly.
    """
    del b1  # mathematically cancelled by training-mode BN mean subtraction

    n, d_in = x.shape
    hidden = w1.shape[1]
    d_out = w2.shape[1]
    f32 = jnp.float32

    # Pad feature dims to lane multiples, batch to a multiple of the row tile.
    d_in_p = _round_up(d_in, LANE)
    hid_p = _round_up(hidden, LANE)
    out_p = _round_up(d_out, LANE)
    tile_n = _pick_tile_n(n, d_in_p, hid_p, out_p)
    n_p = _round_up(n, tile_n)
    nt = n_p // tile_n

    xp = jnp.zeros((n_p, d_in_p), compute_dtype).at[:n, :d_in].set(
        x.astype(compute_dtype))
    w1p = jnp.zeros((d_in_p, hid_p), compute_dtype).at[:d_in, :hidden].set(
        w1.astype(compute_dtype))
    w2p = jnp.zeros((hid_p, out_p), compute_dtype).at[:hidden, :d_out].set(
        w2.astype(compute_dtype))
    b2p = jnp.zeros((1, out_p), f32).at[:, :d_out].set(
        b2.reshape(1, -1).astype(f32))
    gp = jnp.zeros((1, hid_p), f32).at[:, :hidden].set(
        gamma.reshape(1, -1).astype(f32))
    bp = jnp.zeros((1, hid_p), f32).at[:, :hidden].set(
        beta.reshape(1, -1).astype(f32))

    # ---------------- phase 1: global batch statistics ----------------------
    stats_cost = pl.CostEstimate(
        flops=2 * n_p * d_in_p * hid_p + 3 * n_p * hid_p,
        transcendentals=0,
        bytes_accessed=4 * (n_p * d_in_p + d_in_p * hid_p + 2 * hid_p))
    sums, sumsqs = pl.pallas_call(
        _stats_kernel,
        out_shape=(jax.ShapeDtypeStruct((1, hid_p), f32),
                   jax.ShapeDtypeStruct((1, hid_p), f32)),
        grid=(nt,),
        in_specs=[pl.BlockSpec((tile_n, d_in_p), lambda i: (i, 0)),
                  pl.BlockSpec((d_in_p, hid_p), lambda i: (0, 0))],
        out_specs=(pl.BlockSpec((1, hid_p), lambda i: (0, 0)),
                   pl.BlockSpec((1, hid_p), lambda i: (0, 0))),
        compiler_params=pltpu.CompilerParams(
            dimension_semantics=("arbitrary",)),
        cost_estimate=stats_cost,
    )(xp, w1p)

    # Fold BN into one per-feature FMA (tiny (1, H) math, done outside).
    inv_n = 1.0 / n                           # divide by the TRUE batch size
    mean = sums * inv_n
    var = jnp.maximum(sumsqs * inv_n - mean * mean, 0.0)   # biased variance
    scale = gp * jax.lax.rsqrt(var + BN_EPS)
    shift = bp - mean * scale

    # ---------------- phase 2: normalize + ReLU + linear02 -------------------
    fwd_cost = pl.CostEstimate(
        flops=2 * n_p * (d_in_p * hid_p + hid_p * out_p) + 3 * n_p * hid_p,
        transcendentals=0,
        bytes_accessed=4 * (n_p * d_in_p + d_in_p * hid_p + hid_p * out_p
                            + n_p * out_p + 2 * hid_p + out_p))
    out = pl.pallas_call(
        _fwd_kernel,
        out_shape=jax.ShapeDtypeStruct((n_p, out_p), f32),
        grid=(nt,),
        in_specs=[pl.BlockSpec((tile_n, d_in_p), lambda i: (i, 0)),
                  pl.BlockSpec((d_in_p, hid_p), lambda i: (0, 0)),
                  pl.BlockSpec((1, hid_p), lambda i: (0, 0)),
                  pl.BlockSpec((1, hid_p), lambda i: (0, 0)),
                  pl.BlockSpec((hid_p, out_p), lambda i: (0, 0)),
                  pl.BlockSpec((1, out_p), lambda i: (0, 0))],
        out_specs=pl.BlockSpec((tile_n, out_p), lambda i: (i, 0)),
        compiler_params=pltpu.CompilerParams(
            dimension_semantics=("parallel",)),
        cost_estimate=fwd_cost,
    )(xp, w1p, scale, shift, w2p, b2p)

    return out[:n, :d_out]


def init_params(key, input_dim, hidden_dim, output_dim):
    """Deterministic PyTorch-style init (uniform(-1/sqrt(fan_in), +1/sqrt(fan_in)))."""
    k1, k2, k3, k4 = jax.random.split(key, 4)
    bound1 = 1.0 / (input_dim ** 0.5)
    bound2 = 1.0 / (hidden_dim ** 0.5)
    w1 = jax.random.uniform(k1, (input_dim, hidden_dim), jnp.float32,
                            -bound1, bound1)
    b1 = jax.random.uniform(k2, (1, hidden_dim), jnp.float32, -bound1, bound1)
    gamma = jnp.ones((1, hidden_dim), jnp.float32)   # BatchNorm1d weight
    beta = jnp.zeros((1, hidden_dim), jnp.float32)   # BatchNorm1d bias
    w2 = jax.random.uniform(k3, (hidden_dim, output_dim), jnp.float32,
                            -bound2, bound2)
    b2 = jax.random.uniform(k4, (1, output_dim), jnp.float32, -bound2, bound2)
    return w1, b1, gamma, beta, w2, b2


if __name__ == "__main__":
    # Small shapes consistent with the module's forward: x is (batch, input_dim).
    batch, input_dim, hidden_dim, output_dim = 8, 32, 64, 16

    key = jax.random.PRNGKey(0)
    kx, kp = jax.random.split(key)
    x = jax.random.normal(kx, (batch, input_dim), jnp.float32)
    params = init_params(kp, input_dim, hidden_dim, output_dim)

    fwd = jax.jit(downstream_classification)
    out = fwd(x, *params)
    jax.block_until_ready(out)

    # Pure-JAX reference with the module's exact semantics (including b1,
    # which the kernel drops because training-mode BN cancels it).
    w1, b1, gamma, beta, w2, b2 = params
    h = x @ w1 + b1
    mean = h.mean(axis=0, keepdims=True)
    var = ((h - mean) ** 2).mean(axis=0, keepdims=True)
    h = (h - mean) / jnp.sqrt(var + BN_EPS) * gamma + beta
    h = jnp.maximum(h, 0.0)
    ref = h @ w2 + b2

    assert out.shape == (batch, output_dim)
    assert jnp.allclose(out, ref, atol=2e-5, rtol=1e-5), \
        float(jnp.max(jnp.abs(out - ref)))

    print("KERNEL_OK")
</pallas_src>

<mosaic_0001>
module attributes {stable_mosaic.version = 11 : i64} {
  func.func @_fwd_kernel(%arg0: i32, %arg1: memref<8x128xf32, #tpu.memory_space<vmem>>, %arg2: memref<128x128xf32, #tpu.memory_space<vmem>>, %arg3: memref<1x128xf32, #tpu.memory_space<vmem>>, %arg4: memref<1x128xf32, #tpu.memory_space<vmem>>, %arg5: memref<128x128xf32, #tpu.memory_space<vmem>>, %arg6: memref<1x128xf32, #tpu.memory_space<vmem>>, %arg7: memref<8x128xf32, #tpu.memory_space<vmem>>) attributes {dimension_semantics = [#tpu.dimension_semantics<parallel>], iteration_bounds = array<i64: 1>, scalar_prefetch = 0 : i64, scratch_operands = 0 : i64, tpu.core_type = #tpu.core_type<tc>, window_params = [{transform_indices = @transform_0, window_bounds = array<i64: 8, 128>}, {pipeline_mode = #tpu.pipeline_mode<synchronous>, transform_indices = @transform_1, window_bounds = array<i64: 128, 128>}, {pipeline_mode = #tpu.pipeline_mode<synchronous>, transform_indices = @transform_2, window_bounds = array<i64: 1, 128>}, {pipeline_mode = #tpu.pipeline_mode<synchronous>, transform_indices = @transform_3, window_bounds = array<i64: 1, 128>}, {pipeline_mode = #tpu.pipeline_mode<synchronous>, transform_indices = @transform_4, window_bounds = array<i64: 128, 128>}, {pipeline_mode = #tpu.pipeline_mode<synchronous>, transform_indices = @transform_5, window_bounds = array<i64: 1, 128>}, {transform_indices = @transform_6, window_bounds = array<i64: 8, 128>}]} {
    %c0 = arith.constant 0 : index
    %c0_0 = arith.constant 0 : index
    %0 = vector.load %arg1[%c0, %c0_0] : memref<8x128xf32, #tpu.memory_space<vmem>>, vector<8x128xf32>
    %c0_1 = arith.constant 0 : index
    %c0_2 = arith.constant 0 : index
    %1 = vector.load %arg2[%c0_1, %c0_2] : memref<128x128xf32, #tpu.memory_space<vmem>>, vector<128x128xf32>
    %cst = arith.constant dense<0.000000e+00> : vector<8x128xf32>
    %2 = tpu.matmul %0, %1, %cst {dimension_numbers = #tpu.dot_dimension_numbers<[1], [0], [0], [1], [0, 0, 1, 1], [], []>} : vector<8x128xf32>, vector<128x128xf32>, vector<8x128xf32> -> vector<8x128xf32>
    %c0_3 = arith.constant 0 : index
    %c0_4 = arith.constant 0 : index
    %3 = vector.load %arg3[%c0_3, %c0_4] : memref<1x128xf32, #tpu.memory_space<vmem>>, vector<1x128xf32>
    %4 = vector.broadcast %3 : vector<1x128xf32> to vector<8x128xf32>
    %5 = arith.mulf %2, %4 : vector<8x128xf32>
    %c0_5 = arith.constant 0 : index
    %c0_6 = arith.constant 0 : index
    %6 = vector.load %arg4[%c0_5, %c0_6] : memref<1x128xf32, #tpu.memory_space<vmem>>, vector<1x128xf32>
    %7 = vector.broadcast %6 : vector<1x128xf32> to vector<8x128xf32>
    %8 = arith.addf %5, %7 : vector<8x128xf32>
    %cst_7 = arith.constant 0.000000e+00 : f32
    %9 = vector.broadcast %cst_7 : f32 to vector<8x128xf32>
    %10 = arith.maximumf %8, %9 : vector<8x128xf32>
    %c0_8 = arith.constant 0 : index
    %c0_9 = arith.constant 0 : index
    %11 = vector.load %arg5[%c0_8, %c0_9] : memref<128x128xf32, #tpu.memory_space<vmem>>, vector<128x128xf32>
    %cst_10 = arith.constant dense<0.000000e+00> : vector<8x128xf32>
    %12 = tpu.matmul %10, %11, %cst_10 {dimension_numbers = #tpu.dot_dimension_numbers<[1], [0], [0], [1], [0, 0, 1, 1], [], []>} : vector<8x128xf32>, vector<128x128xf32>, vector<8x128xf32> -> vector<8x128xf32>
    %c0_11 = arith.constant 0 : index
    %c0_12 = arith.constant 0 : index
    %13 = vector.load %arg6[%c0_11, %c0_12] : memref<1x128xf32, #tpu.memory_space<vmem>>, vector<1x128xf32>
    %14 = vector.broadcast %13 : vector<1x128xf32> to vector<8x128xf32>
    %15 = arith.addf %12, %14 : vector<8x128xf32>
    %c0_13 = arith.constant 0 : index
    %c0_14 = arith.constant 0 : index
    %16 = vector.load %arg7[%c0_13, %c0_14] : memref<8x128xf32, #tpu.memory_space<vmem>>, vector<8x128xf32>
    tpu.vector_store %arg7[%c0_13, %c0_14], %15 {strides = array<i32>} : memref<8x128xf32, #tpu.memory_space<vmem>>, vector<8x128xf32>,
    return
  }
  func.func @transform_0(%arg0: i32) -> (i32, i32) {
    %c0_i32 = arith.constant 0 : i32
    %c0_i32_0 = arith.constant 0 : i32
    return %arg0, %c0_i32 : i32, i32
  }
  func.func @transform_1(%arg0: i32) -> (i32, i32) {
    %c0_i32 = arith.constant 0 : i32
    %c0_i32_0 = arith.constant 0 : i32
    %c0_i32_1 = arith.constant 0 : i32
    return %c0_i32, %c0_i32_0 : i32, i32
  }
  func.func @transform_2(%arg0: i32) -> (i32, i32) {
    %c0_i32 = arith.constant 0 : i32
    %c0_i32_0 = arith.constant 0 : i32
    %c0_i32_1 = arith.constant 0 : i32
    return %c0_i32, %c0_i32_0 : i32, i32
  }
  func.func @transform_3(%arg0: i32) -> (i32, i32) {
    %c0_i32 = arith.constant 0 : i32
    %c0_i32_0 = arith.constant 0 : i32
    %c0_i32_1 = arith.constant 0 : i32
    return %c0_i32, %c0_i32_0 : i32, i32
  }
  func.func @transform_4(%arg0: i32) -> (i32, i32) {
    %c0_i32 = arith.constant 0 : i32
    %c0_i32_0 = arith.constant 0 : i32
    %c0_i32_1 = arith.constant 0 : i32
    return %c0_i32, %c0_i32_0 : i32, i32
  }
  func.func @transform_5(%arg0: i32) -> (i32, i32) {
    %c0_i32 = arith.constant 0 : i32
    %c0_i32_0 = arith.constant 0 : i32
    %c0_i32_1 = arith.constant 0 : i32
    return %c0_i32, %c0_i32_0 : i32, i32
  }
  func.func @transform_6(%arg0: i32) -> (i32, i32) {
    %c0_i32 = arith.constant 0 : i32
    %c0_i32_0 = arith.constant 0 : i32
    return %arg0, %c0_i32 : i32, i32
  }
}

module attributes {stable_mosaic.version = 11 : i64} {
  func.func @_stats_kernel(%arg0: i32, %arg1: memref<8x128xf32, #tpu.memory_space<vmem>>, %arg2: memref<128x128xf32, #tpu.memory_space<vmem>>, %arg3: memref<1x128xf32, #tpu.memory_space<vmem>>, %arg4: memref<1x128xf32, #tpu.memory_space<vmem>>) attributes {dimension_semantics = [#tpu.dimension_semantics<arbitrary>], iteration_bounds = array<i64: 1>, scalar_prefetch = 0 : i64, scratch_operands = 0 : i64, tpu.core_type = #tpu.core_type<tc>, window_params = [{transform_indices = @transform_0, window_bounds = array<i64: 8, 128>}, {pipeline_mode = #tpu.pipeline_mode<synchronous>, transform_indices = @transform_1, window_bounds = array<i64: 128, 128>}, {pipeline_mode = #tpu.pipeline_mode<synchronous>, transform_indices = @transform_2, window_bounds = array<i64: 1, 128>}, {pipeline_mode = #tpu.pipeline_mode<synchronous>, transform_indices = @transform_3, window_bounds = array<i64: 1, 128>}]} {
    %c0_i32 = arith.constant 0 : i32
    %0 = arith.cmpi eq, %arg0, %c0_i32 : i32
    %1 = arith.extui %0 : i1 to i32
    %c0_i32_0 = arith.constant 0 : i32
    %2 = arith.cmpi ne, %1, %c0_i32_0 : i32
    scf.if %2 {
      %cst_14 = arith.constant 0.000000e+00 : f32
      %17 = vector.broadcast %cst_14 : f32 to vector<1x128xf32>
      %c0_15 = arith.constant 0 : index
      %c0_16 = arith.constant 0 : index
      %18 = vector.load %arg3[%c0_15, %c0_16] : memref<1x128xf32, #tpu.memory_space<vmem>>, vector<1x128xf32>
      tpu.vector_store %arg3[%c0_15, %c0_16], %17 {strides = array<i32>} : memref<1x128xf32, #tpu.memory_space<vmem>>, vector<1x128xf32>,
      %cst_17 = arith.constant 0.000000e+00 : f32
      %19 = vector.broadcast %cst_17 : f32 to vector<1x128xf32>
      %c0_18 = arith.constant 0 : index
      %c0_19 = arith.constant 0 : index
      %20 = vector.load %arg4[%c0_18, %c0_19] : memref<1x128xf32, #tpu.memory_space<vmem>>, vector<1x128xf32>
      tpu.vector_store %arg4[%c0_18, %c0_19], %19 {strides = array<i32>} : memref<1x128xf32, #tpu.memory_space<vmem>>, vector<1x128xf32>,
    } else {
    }
    %c0 = arith.constant 0 : index
    %c0_1 = arith.constant 0 : index
    %3 = vector.load %arg1[%c0, %c0_1] : memref<8x128xf32, #tpu.memory_space<vmem>>, vector<8x128xf32>
    %c0_2 = arith.constant 0 : index
    %c0_3 = arith.constant 0 : index
    %4 = vector.load %arg2[%c0_2, %c0_3] : memref<128x128xf32, #tpu.memory_space<vmem>>, vector<128x128xf32>
    %cst = arith.constant dense<0.000000e+00> : vector<8x128xf32>
    %5 = tpu.matmul %3, %4, %cst {dimension_numbers = #tpu.dot_dimension_numbers<[1], [0], [0], [1], [0, 0, 1, 1], [], []>} : vector<8x128xf32>, vector<128x128xf32>, vector<8x128xf32> -> vector<8x128xf32>
    %c0_4 = arith.constant 0 : index
    %c0_5 = arith.constant 0 : index
    %6 = vector.load %arg3[%c0_4, %c0_5] : memref<1x128xf32, #tpu.memory_space<vmem>>, vector<1x128xf32>
    %cst_6 = arith.constant dense<0.000000e+00> : vector<128xf32>
    %7 = vector.multi_reduction <add>, %5, %cst_6 [0] : vector<8x128xf32> to vector<128xf32>
    %8 = vector.shape_cast %7 : vector<128xf32> to vector<1x128xf32>
    %9 = arith.addf %6, %8 : vector<1x128xf32>
    %c0_7 = arith.constant 0 : index
    %c0_8 = arith.constant 0 : index
    %10 = vector.load %arg3[%c0_7, %c0_8] : memref<1x128xf32, #tpu.memory_space<vmem>>, vector<1x128xf32>
    tpu.vector_store %arg3[%c0_7, %c0_8], %9 {strides = array<i32>} : memref<1x128xf32, #tpu.memory_space<vmem>>, vector<1x128xf32>,
    %c0_9 = arith.constant 0 : index
    %c0_10 = arith.constant 0 : index
    %11 = vector.load %arg4[%c0_9, %c0_10] : memref<1x128xf32, #tpu.memory_space<vmem>>, vector<1x128xf32>
    %12 = arith.mulf %5, %5 : vector<8x128xf32>
    %cst_11 = arith.constant dense<0.000000e+00> : vector<128xf32>
    %13 = vector.multi_reduction <add>, %12, %cst_11 [0] : vector<8x128xf32> to vector<128xf32>
    %14 = vector.shape_cast %13 : vector<128xf32> to vector<1x128xf32>
    %15 = arith.addf %11, %14 : vector<1x128xf32>
    %c0_12 = arith.constant 0 : index
    %c0_13 = arith.constant 0 : index
    %16 = vector.load %arg4[%c0_12, %c0_13] : memref<1x128xf32, #tpu.memory_space<vmem>>, vector<1x128xf32>
    tpu.vector_store %arg4[%c0_12, %c0_13], %15 {strides = array<i32>} : memref<1x128xf32, #tpu.memory_space<vmem>>, vector<1x128xf32>,
    return
  }
  func.func @transform_0(%arg0: i32) -> (i32, i32) {
    %c0_i32 = arith.constant 0 : i32
    %c0_i32_0 = arith.constant 0 : i32
    return %arg0, %c0_i32 : i32, i32
  }
  func.func @transform_1(%arg0: i32) -> (i32, i32) {
    %c0_i32 = arith.constant 0 : i32
    %c0_i32_0 = arith.constant 0 : i32
    %c0_i32_1 = arith.constant 0 : i32
    return %c0_i32, %c0_i32_0 : i32, i32
  }
  func.func @transform_2(%arg0: i32) -> (i32, i32) {
    %c0_i32 = arith.constant 0 : i32
    %c0_i32_0 = arith.constant 0 : i32
    %c0_i32_1 = arith.constant 0 : i32
    return %c0_i32, %c0_i32_0 : i32, i32
  }
  func.func @transform_3(%arg0: i32) -> (i32, i32) {
    %c0_i32 = arith.constant 0 : i32
    %c0_i32_0 = arith.constant 0 : i32
    %c0_i32_1 = arith.constant 0 : i32
    return %c0_i32, %c0_i32_0 : i32, i32
  }
}

</mosaic_0001>

<llo_original>
// kernel: downstream_classification.2
$region0: #{downstream_classification.2}
  #allocation0 [shape = 'u32[]', space=smem, size = 0x4, offset = 0x4, fixed_abs, tag = 'smem constant byte address 0x4 - core index']
  #allocation1 [shape = 'u32[144,128]{1,0:T(1,128)}', space=vmem, size = 0x12000, scoped, tag = 'internal scratch']
  %s0 = inlined_call_operand.vmem [shape: f32[8,128], index: 0, kind: input, shape index: {}]
  %s1 = inlined_call_operand.vmem [shape: f32[128,128], index: 1, kind: input, shape index: {}]
  %s2 = inlined_call_operand.vmem [shape: f32[1,128], index: 2, kind: output, shape index: {0}]
  %s3 = inlined_call_operand.vmem [shape: f32[1,128], index: 3, kind: output, shape index: {1}]
  %4 = xla_tuple %s2, %s3
  %s5 = sld [smem:[#allocation0]]
  $region30: #{downstream_classification.2} parent=0
    _
  %s7 = ssub.s32 1, %s5
  %s8 = scalar_select 0, %s7, %s5
  // Predicated region
  $region2: #{downstream_classification.2} parent=0 // pred_check
    _
  $region3: #{downstream_classification.2} parent=0 // pred_check_branch
    %10 = sbr.rel (0) target = $region5
  $region4: #{downstream_classification.2} parent=0 // pred_region
    _
  $region5: #{downstream_classification.2} parent=0 // pred_fallthru
    _
  // Predicated region
  $region6: #{downstream_classification.2} parent=0 // pred_check
    _
  $region7: #{downstream_classification.2} parent=0 // pred_check_branch
    %12 = sbr.rel (0) target = $region9
  $region8: #{downstream_classification.2} parent=0 // pred_region
    _
  $region9: #{downstream_classification.2} parent=0 // pred_fallthru
    _
  %p13 = scmp.eq.s32.totalorder 0, 0
  // Predicated region
  $region10: #{downstream_classification.2} parent=0 // pred_check
    %p14 = pneg %p13
  $region11: #{downstream_classification.2} parent=0 // pred_check_branch
    %16 = sbr.rel (%p14) target = $region13
  $region12: #{downstream_classification.2} parent=0 // pred_region
    %17 = vst [vmem:[%s2] sm:$0x1] 0.0
    %18 = vst [vmem:[%s3] sm:$0x1] 0.0
  $region13: #{downstream_classification.2} parent=0 // pred_fallthru
    _
  %v19 = vld [vmem:[%s0] sm:$0xff]
  %v20 = vld [vmem:[%s1] sm:$0xff]
  %v21 = vld [vmem:[%s1 + $0x8] sm:$0xff]
  %v22 = vld [vmem:[%s1 + $0x10] sm:$0xff]
  %v23 = vld [vmem:[%s1 + $0x18] sm:$0xff]
  %v24 = vld [vmem:[%s1 + $0x20] sm:$0xff]
  %v25 = vld [vmem:[%s1 + $0x28] sm:$0xff]
  %v26 = vld [vmem:[%s1 + $0x30] sm:$0xff]
  %v27 = vld [vmem:[%s1 + $0x38] sm:$0xff]
  %v28 = vld [vmem:[%s1 + $0x40] sm:$0xff]
  %v29 = vld [vmem:[%s1 + $0x48] sm:$0xff]
  %v30 = vld [vmem:[%s1 + $0x50] sm:$0xff]
  %v31 = vld [vmem:[%s1 + $0x58] sm:$0xff]
  %v32 = vld [vmem:[%s1 + $0x60] sm:$0xff]
  %v33 = vld [vmem:[%s1 + $0x68] sm:$0xff]
  %v34 = vld [vmem:[%s1 + $0x70] sm:$0xff]
  %v35 = vld [vmem:[%s1 + $0x78] sm:$0xff]
  %36 = vmatprep.subr.mxu0 0.0
  %37 = vmatpush1.msra.mxu0 %v20
  %38 = vmatprep.subr.mxu0 0.0
  %39 = vmatpush1.msra.mxu0 %v21
  %40 = vmatprep.subr.mxu0 0.0
  %41 = vmatpush1.msra.mxu0 %v22
  %42 = vmatprep.subr.mxu0 0.0
  %43 = vmatpush1.msra.mxu0 %v23
  %44 = vmatprep.subr.mxu0 0.0
  %45 = vmatpush1.msra.mxu0 %v24
  %46 = vmatprep.subr.mxu0 0.0
  %47 = vmatpush1.msra.mxu0 %v25
  %48 = vmatprep.subr.mxu0 0.0
  %49 = vmatpush1.msra.mxu0 %v26
  %50 = vmatprep.subr.mxu0 0.0
  %51 = vmatpush1.msra.mxu0 %v27
  %52 = vmatprep.subr.mxu0 0.0
  %53 = vmatpush1.msra.mxu0 %v28
  %54 = vmatprep.subr.mxu0 0.0
  %55 = vmatpush1.msra.mxu0 %v29
  %56 = vmatprep.subr.mxu0 0.0
  %57 = vmatpush1.msra.mxu0 %v30
  %58 = vmatprep.subr.mxu0 0.0
  %59 = vmatpush1.msra.mxu0 %v31
  %60 = vmatprep.subr.mxu0 0.0
  %61 = vmatpush1.msra.mxu0 %v32
  %62 = vmatprep.subr.mxu0 0.0
  %63 = vmatpush1.msra.mxu0 %v33
  %64 = vmatprep.subr.mxu0 0.0
  %65 = vmatpush1.msra.mxu0 %v34
  %66 = vmatprep.subr.mxu0 0.0
  %67 = vmatpush1.msra.mxu0 %v35
  %68 = vmatprep.subr.mxu0 0.0
  %69 = vmatpush1.msra.mxu0 0.0
  %70 = vmatprep.subr.mxu0 0.0
  %71 = vmatpush1.msra.mxu0 0.0
  %72 = vmatprep.subr.mxu0 0.0
  %73 = vmatpush1.msra.mxu0 0.0
  %74 = vmatprep.subr.mxu0 0.0
  %75 = vmatpush1.msra.mxu0 0.0
  %76 = vmatprep.subr.mxu0 0.0
  %77 = vmatpush1.msra.mxu0 0.0
  %78 = vmatprep.subr.mxu0 0.0
  %79 = vmatpush1.msra.mxu0 0.0
  %80 = vmatprep.subr.mxu0 0.0
  %81 = vmatpush1.msra.mxu0 0.0
  %82 = vmatprep.subr.mxu0 0.0
  %83 = vmatpush1.msra.mxu0 0.0
  %84 = vmatprep.subr.mxu0 0.0
  %85 = vmatpush1.msra.mxu0 0.0
  %86 = vmatprep.subr.mxu0 0.0
  %87 = vmatpush1.msra.mxu0 0.0
  %88 = vmatprep.subr.mxu0 0.0
  %89 = vmatpush1.msra.mxu0 0.0
  %90 = vmatprep.subr.mxu0 0.0
  %91 = vmatpush1.msra.mxu0 0.0
  %92 = vmatprep.subr.mxu0 0.0
  %93 = vmatpush1.msra.mxu0 0.0
  %94 = vmatprep.subr.mxu0 0.0
  %95 = vmatpush1.msra.mxu0 0.0
  %96 = vmatprep.subr.mxu0 0.0
  %97 = vmatpush1.msra.mxu0 0.0
  %98 = vmatprep.subr.mxu0 0.0
  %99 = vmatpush1.msra.mxu0 0.0
  %100 = vmatprep.mubr.f32.mxu0 0.0
  %101 = vmatmul.mubr.f32.gmra.mrb[0].mxu0 %v19
  %v102 = vpop.f32.mrb[0].mxu0
  %v103 = vadd.f32 0.0, %v102
  %v104 = vpop.f32.mrb[0].mxu0
  %105 = vdwg.mxu0
  %v106 = vld [vmem:[%s2] sm:$0x1]
  %v107 = vrot.slane %v103, 4
  %v108 = vadd.f32 %v103, %v107
  %v109 = vrot.slane %v108, 2
  %v110 = vadd.f32 %v108, %v109
  %v111 = vrot.slane %v110, 1
  %v112 = vadd.f32 %v110, %v111
  %v113 = vadd.f32 %v106, %v112
  %114 = vst [vmem:[%s2] sm:$0x1] %v113
  %v115 = vld [vmem:[%s3] sm:$0x1]
  %v116 = vmul.f32 %v103, %v103
  %v117 = vrot.slane %v116, 4
  %v118 = vadd.f32 %v116, %v117
  %v119 = vrot.slane %v118, 2
  %v120 = vadd.f32 %v118, %v119
  %v121 = vrot.slane %v120, 1
  %v122 = vadd.f32 %v120, %v121
  %v123 = vadd.f32 %v115, %v122
  %124 = vst [vmem:[%s3] sm:$0x1] %v123
  // Predicated region
  $region14: #{downstream_classification.2} parent=0 // pred_check
    _
  $region15: #{downstream_classification.2} parent=0 // pred_check_branch
    %126 = sbr.rel (0) target = $region17
  $region16: #{downstream_classification.2} parent=0 // pred_region
    _
  $region17: #{downstream_classification.2} parent=0 // pred_fallthru
    _
  // Predicated region
  $region18: #{downstream_classification.2} parent=0 // pred_check
    _
  $region19: #{downstream_classification.2} parent=0 // pred_check_branch
    %128 = sbr.rel (0) target = $region21
  $region20: #{downstream_classification.2} parent=0 // pred_region
    _
  $region21: #{downstream_classification.2} parent=0 // pred_fallthru
    _
  // Predicated region
  $region22: #{downstream_classification.2} parent=0 // pred_check
    _
  $region23: #{downstream_classification.2} parent=0 // pred_check_branch
    %130 = sbr.rel (0) target = $region25
  $region24: #{downstream_classification.2} parent=0 // pred_region
    _
  $region25: #{downstream_classification.2} parent=0 // pred_fallthru
    _
  // Predicated region
  $region26: #{downstream_classification.2} parent=0 // pred_check
    _
  $region27: #{downstream_classification.2} parent=0 // pred_check_branch
    %132 = sbr.rel (0) target = $region29
  $region28: #{downstream_classification.2} parent=0 // pred_region
    _
  $region29: #{downstream_classification.2} parent=0 // pred_fallthru
    _

// kernel: downstream_classification.3
$region0: #{downstream_classification.3}
  #allocation0 [shape = 'u32[]', space=smem, size = 0x4, offset = 0x4, fixed_abs, tag = 'smem constant byte address 0x4 - core index']
  #allocation1 [shape = 'u32[144,128]{1,0:T(1,128)}', space=vmem, size = 0x12000, scoped, tag = 'internal scratch']
  %s0 = inlined_call_operand.vmem [shape: f32[8,128], index: 0, kind: input, shape index: {}]
  %s1 = inlined_call_operand.vmem [shape: f32[128,128], index: 1, kind: input, shape index: {}]
  %s2 = inlined_call_operand.vmem [shape: f32[1,128], index: 2, kind: input, shape index: {}]
  %s3 = inlined_call_operand.vmem [shape: f32[1,128], index: 3, kind: input, shape index: {}]
  %s4 = inlined_call_operand.vmem [shape: f32[128,128], index: 4, kind: input, shape index: {}]
  %s5 = inlined_call_operand.vmem [shape: f32[1,128], index: 5, kind: input, shape index: {}]
  %s6 = inlined_call_operand.hbm [shape: f32[8,128], index: 6, kind: output, shape index: {}]
  %s7 = sld [smem:[#allocation0]]
  $region34: #{downstream_classification.3} parent=0
    _
  %s9 = ssub.s32 1, %s7
  %s10 = scalar_select 0, %s9, %s7
  $region1: #{downstream_classification.3} parent=0
    #allocation2 [shape = 'u8[4096]{0}', space=vmem, size = 0x1000, scoped, tag = 'output window, operand 0, single buffered']
    #allocation3 [shape = 's32[1]{0}', space=sflag, size = 0x4, scoped, tag = 'scoped memory for downstream_classification.3']
    %11 = vsyncpa [#allocation3], 0
    // Predicated region
    $region2: #{downstream_classification.3} parent=1 // pred_check
      _
    $region3: #{downstream_classification.3} parent=1 // pred_check_branch
      %13 = sbr.rel (0) target = $region5
    $region4: #{downstream_classification.3} parent=1 // pred_region
      _
    $region5: #{downstream_classification.3} parent=1 // pred_fallthru
      _
    // Predicated region
    $region6: #{downstream_classification.3} parent=1 // pred_check
      _
    $region7: #{downstream_classification.3} parent=1 // pred_check_branch
      %15 = sbr.rel (0) target = $region9
    $region8: #{downstream_classification.3} parent=1 // pred_region
      _
    $region9: #{downstream_classification.3} parent=1 // pred_fallthru
      _
    // Predicated region
    $region10: #{downstream_classification.3} parent=1 // pred_check
      _
    $region11: #{downstream_classification.3} parent=1 // pred_check_branch
      %17 = sbr.rel (0) target = $region13
    $region12: #{downstream_classification.3} parent=1 // pred_region
      _
    $region13: #{downstream_classification.3} parent=1 // pred_fallthru
      _
    // Predicated region
    $region14: #{downstream_classification.3} parent=1 // pred_check
      _
    $region15: #{downstream_classification.3} parent=1 // pred_check_branch
      %19 = sbr.rel (0) target = $region17
    $region16: #{downstream_classification.3} parent=1 // pred_region
      _
    $region17: #{downstream_classification.3} parent=1 // pred_fallthru
      _
    // Predicated region
    $region18: #{downstream_classification.3} parent=1 // pred_check
      _
    $region19: #{downstream_classification.3} parent=1 // pred_check_branch
      %21 = sbr.rel (0) target = $region21
    $region20: #{downstream_classification.3} parent=1 // pred_region
      _
    $region21: #{downstream_classification.3} parent=1 // pred_fallthru
      _
    // Predicated region
    $region22: #{downstream_classification.3} parent=1 // pred_check
      _
    $region23: #{downstream_classification.3} parent=1 // pred_check_branch
      %23 = sbr.rel (0) target = $region25
    $region24: #{downstream_classification.3} parent=1 // pred_region
      _
    $region25: #{downstream_classification.3} parent=1 // pred_fallthru
      _
    %v24 = vld [vmem:[%s0] sm:$0xff]
    %v25 = vld [vmem:[%s1] sm:$0xff]
    %v26 = vld [vmem:[%s1 + $0x8] sm:$0xff]
    %v27 = vld [vmem:[%s1 + $0x10] sm:$0xff]
    %v28 = vld [vmem:[%s1 + $0x18] sm:$0xff]
    %v29 = vld [vmem:[%s1 + $0x20] sm:$0xff]
    %v30 = vld [vmem:[%s1 + $0x28] sm:$0xff]
    %v31 = vld [vmem:[%s1 + $0x30] sm:$0xff]
    %v32 = vld [vmem:[%s1 + $0x38] sm:$0xff]
    %v33 = vld [vmem:[%s1 + $0x40] sm:$0xff]
    %v34 = vld [vmem:[%s1 + $0x48] sm:$0xff]
    %v35 = vld [vmem:[%s1 + $0x50] sm:$0xff]
    %v36 = vld [vmem:[%s1 + $0x58] sm:$0xff]
    %v37 = vld [vmem:[%s1 + $0x60] sm:$0xff]
    %v38 = vld [vmem:[%s1 + $0x68] sm:$0xff]
    %v39 = vld [vmem:[%s1 + $0x70] sm:$0xff]
    %v40 = vld [vmem:[%s1 + $0x78] sm:$0xff]
    %41 = vmatprep.subr.mxu0 0.0
    %42 = vmatpush1.msra.mxu0 %v25
    %43 = vmatprep.subr.mxu0 0.0
    %44 = vmatpush1.msra.mxu0 %v26
    %45 = vmatprep.subr.mxu0 0.0
    %46 = vmatpush1.msra.mxu0 %v27
    %47 = vmatprep.subr.mxu0 0.0
    %48 = vmatpush1.msra.mxu0 %v28
    %49 = vmatprep.subr.mxu0 0.0
    %50 = vmatpush1.msra.mxu0 %v29
    %51 = vmatprep.subr.mxu0 0.0
    %52 = vmatpush1.msra.mxu0 %v30
    %53 = vmatprep.subr.mxu0 0.0
    %54 = vmatpush1.msra.mxu0 %v31
    %55 = vmatprep.subr.mxu0 0.0
    %56 = vmatpush1.msra.mxu0 %v32
    %57 = vmatprep.subr.mxu0 0.0
    %58 = vmatpush1.msra.mxu0 %v33
    %59 = vmatprep.subr.mxu0 0.0
    %60 = vmatpush1.msra.mxu0 %v34
    %61 = vmatprep.subr.mxu0 0.0
    %62 = vmatpush1.msra.mxu0 %v35
    %63 = vmatprep.subr.mxu0 0.0
    %64 = vmatpush1.msra.mxu0 %v36
    %65 = vmatprep.subr.mxu0 0.0
    %66 = vmatpush1.msra.mxu0 %v37
    %67 = vmatprep.subr.mxu0 0.0
    %68 = vmatpush1.msra.mxu0 %v38
    %69 = vmatprep.subr.mxu0 0.0
    %70 = vmatpush1.msra.mxu0 %v39
    %71 = vmatprep.subr.mxu0 0.0
    %72 = vmatpush1.msra.mxu0 %v40
    %73 = vmatprep.subr.mxu0 0.0
    %74 = vmatpush1.msra.mxu0 0.0
    %75 = vmatprep.subr.mxu0 0.0
    %76 = vmatpush1.msra.mxu0 0.0
    %77 = vmatprep.subr.mxu0 0.0
    %78 = vmatpush1.msra.mxu0 0.0
    %79 = vmatprep.subr.mxu0 0.0
    %80 = vmatpush1.msra.mxu0 0.0
    %81 = vmatprep.subr.mxu0 0.0
    %82 = vmatpush1.msra.mxu0 0.0
    %83 = vmatprep.subr.mxu0 0.0
    %84 = vmatpush1.msra.mxu0 0.0
    %85 = vmatprep.subr.mxu0 0.0
    %86 = vmatpush1.msra.mxu0 0.0
    %87 = vmatprep.subr.mxu0 0.0
    %88 = vmatpush1.msra.mxu0 0.0
    %89 = vmatprep.subr.mxu0 0.0
    %90 = vmatpush1.msra.mxu0 0.0
    %91 = vmatprep.subr.mxu0 0.0
    %92 = vmatpush1.msra.mxu0 0.0
    %93 = vmatprep.subr.mxu0 0.0
    %94 = vmatpush1.msra.mxu0 0.0
    %95 = vmatprep.subr.mxu0 0.0
    %96 = vmatpush1.msra.mxu0 0.0
    %97 = vmatprep.subr.mxu0 0.0
    %98 = vmatpush1.msra.mxu0 0.0
    %99 = vmatprep.subr.mxu0 0.0
    %100 = vmatpush1.msra.mxu0 0.0
    %101 = vmatprep.subr.mxu0 0.0
    %102 = vmatpush1.msra.mxu0 0.0
    %103 = vmatprep.subr.mxu0 0.0
    %104 = vmatpush1.msra.mxu0 0.0
    %105 = vmatprep.mubr.f32.mxu0 0.0
    %106 = vmatmul.mubr.f32.gmra.mrb[0].mxu0 %v24
    %v107 = vpop.f32.mrb[0].mxu0
    %v108 = vadd.f32 0.0, %v107
    %v109 = vpop.f32.mrb[0].mxu0
    %110 = vdwg.mxu0
    %v111 = vld [vmem:[%s2] sm:$0x1]
    %v113 = vlaneseq
    %v114 = vshrl.u32 %v113, 7
    %v115 = vsub.s32 0, %v114
    %v116 = vrot.slane %v111, %v115
    %v118 = vmul.f32 %v108, %v116
    %v119 = vld [vmem:[%s3] sm:$0x1]
    %v121 = vlaneseq
    %v122 = vshrl.u32 %v121, 7
    %v123 = vsub.s32 0, %v122
    %v124 = vrot.slane %v119, %v123
    %v126 = vadd.f32 %v118, %v124
    %v127 = vmax.f32 %v126, 0.0
    %v128 = vld [vmem:[%s4] sm:$0xff]
    %v129 = vld [vmem:[%s4 + $0x8] sm:$0xff]
    %v130 = vld [vmem:[%s4 + $0x10] sm:$0xff]
    %v131 = vld [vmem:[%s4 + $0x18] sm:$0xff]
    %v132 = vld [vmem:[%s4 + $0x20] sm:$0xff]
    %v133 = vld [vmem:[%s4 + $0x28] sm:$0xff]
    %v134 = vld [vmem:[%s4 + $0x30] sm:$0xff]
    %v135 = vld [vmem:[%s4 + $0x38] sm:$0xff]
    %v136 = vld [vmem:[%s4 + $0x40] sm:$0xff]
    %v137 = vld [vmem:[%s4 + $0x48] sm:$0xff]
    %v138 = vld [vmem:[%s4 + $0x50] sm:$0xff]
    %v139 = vld [vmem:[%s4 + $0x58] sm:$0xff]
    %v140 = vld [vmem:[%s4 + $0x60] sm:$0xff]
    %v141 = vld [vmem:[%s4 + $0x68] sm:$0xff]
    %v142 = vld [vmem:[%s4 + $0x70] sm:$0xff]
    %v143 = vld [vmem:[%s4 + $0x78] sm:$0xff]
    %v144 = vld [vmem:[%s5] sm:$0x1]
    %v146 = vlaneseq
    %v147 = vshrl.u32 %v146, 7
    %v148 = vsub.s32 0, %v147
    %v149 = vrot.slane %v144, %v148
    %151 = vmatprep.subr.mxu0 0.0
    %152 = vmatpush1.msra.mxu0 %v128
    %153 = vmatprep.subr.mxu0 0.0
    %154 = vmatpush1.msra.mxu0 %v129
    %155 = vmatprep.subr.mxu0 0.0
    %156 = vmatpush1.msra.mxu0 %v130
    %157 = vmatprep.subr.mxu0 0.0
    %158 = vmatpush1.msra.mxu0 %v131
    %159 = vmatprep.subr.mxu0 0.0
    %160 = vmatpush1.msra.mxu0 %v132
    %161 = vmatprep.subr.mxu0 0.0
    %162 = vmatpush1.msra.mxu0 %v133
    %163 = vmatprep.subr.mxu0 0.0
    %164 = vmatpush1.msra.mxu0 %v134
    %165 = vmatprep.subr.mxu0 0.0
    %166 = vmatpush1.msra.mxu0 %v135
    %167 = vmatprep.subr.mxu0 0.0
    %168 = vmatpush1.msra.mxu0 %v136
    %169 = vmatprep.subr.mxu0 0.0
    %170 = vmatpush1.msra.mxu0 %v137
    %171 = vmatprep.subr.mxu0 0.0
    %172 = vmatpush1.msra.mxu0 %v138
    %173 = vmatprep.subr.mxu0 0.0
    %174 = vmatpush1.msra.mxu0 %v139
    %175 = vmatprep.subr.mxu0 0.0
    %176 = vmatpush1.msra.mxu0 %v140
    %177 = vmatprep.subr.mxu0 0.0
    %178 = vmatpush1.msra.mxu0 %v141
    %179 = vmatprep.subr.mxu0 0.0
    %180 = vmatpush1.msra.mxu0 %v142
    %181 = vmatprep.subr.mxu0 0.0
    %182 = vmatpush1.msra.mxu0 %v143
    %183 = vmatprep.subr.mxu0 0.0
    %184 = vmatpush1.msra.mxu0 0.0
    %185 = vmatprep.subr.mxu0 0.0
    %186 = vmatpush1.msra.mxu0 0.0
    %187 = vmatprep.subr.mxu0 0.0
    %188 = vmatpush1.msra.mxu0 0.0
    %189 = vmatprep.subr.mxu0 0.0
    %190 = vmatpush1.msra.mxu0 0.0
    %191 = vmatprep.subr.mxu0 0.0
    %192 = vmatpush1.msra.mxu0 0.0
    %193 = vmatprep.subr.mxu0 0.0
    %194 = vmatpush1.msra.mxu0 0.0
    %195 = vmatprep.subr.mxu0 0.0
    %196 = vmatpush1.msra.mxu0 0.0
    %197 = vmatprep.subr.mxu0 0.0
    %198 = vmatpush1.msra.mxu0 0.0
    %199 = vmatprep.subr.mxu0 0.0
    %200 = vmatpush1.msra.mxu0 0.0
    %201 = vmatprep.subr.mxu0 0.0
    %202 = vmatpush1.msra.mxu0 0.0
    %203 = vmatprep.subr.mxu0 0.0
    %204 = vmatpush1.msra.mxu0 0.0
    %205 = vmatprep.subr.mxu0 0.0
    %206 = vmatpush1.msra.mxu0 0.0
    %207 = vmatprep.subr.mxu0 0.0
    %208 = vmatpush1.msra.mxu0 0.0
    %209 = vmatprep.subr.mxu0 0.0
    %210 = vmatpush1.msra.mxu0 0.0
    %211 = vmatprep.subr.mxu0 0.0
    %212 = vmatpush1.msra.mxu0 0.0
    %213 = vmatprep.subr.mxu0 0.0
    %214 = vmatpush1.msra.mxu0 0.0
    %215 = vmatprep.mubr.f32.mxu0 0.0
    %216 = vmatmul.mubr.f32.gmra.mrb[0].mxu0 %v127
    %v217 = vpop.f32.mrb[0].mxu0
    %v218 = vadd.f32 %v149, %v217
    %v219 = vpop.f32.mrb[0].mxu0
    %220 = vdwg.mxu0
    %221 = vst [vmem:[#allocation2] sm:$0xff] %v218
    // Predicated region
    $region26: #{downstream_classification.3} parent=1 // pred_check
      _
    $region27: #{downstream_classification.3} parent=1 // pred_check_branch
      %223 = sbr.rel (0) target = $region29
    $region28: #{downstream_classification.3} parent=1 // pred_region
      %s225 = ssub.s32 128, 128
      %226 = vsyncadd [#allocation3], %s225
      %s228 = sshll.u32 [#allocation2], 4
      %s229 = int_to_ptr.vmem [resolvable:$true] %s228
      %231 = dma.vmem_to_hbm [thread:$0]  %s229, 128, %s6, [#allocation3]
    $region29: #{downstream_classification.3} parent=1 // pred_fallthru
      _
    // Predicated region
    $region30: #{downstream_classification.3} parent=1 // pred_check
      _
    $region31: #{downstream_classification.3} parent=1 // pred_check_branch
      %233 = sbr.rel (0) target = $region33
    $region32: #{downstream_classification.3} parent=1 // pred_region
      %234 = dma.done [#allocation3], 128
    $region33: #{downstream_classification.3} parent=1 // pred_fallthru
      _
    %235 = vsyncpa [#allocation3], 1

</llo_original>
